<compile_context>
chip_gen: v7x
topology: tpu7x:2x2x1
jax: 0.10.0
libtpu: 0.0.40
codegen_flags: <defaults>
</compile_context>

<pallas_src>
import math

import jax
import jax.numpy as jnp
from jax.experimental import pallas as pl
from jax.experimental.pallas import tpu as pltpu


_NEG_BIG = jnp.float32(-1e30)  # exp(-1e30 - m) underflows to exactly 0 in f32


def _head_kernel(x_ref, w1t_ref, b1_ref, w2t_ref, mask2_ref, y_ref, ylab_ref):
    # x: (tb, 2048) bf16 features (post-backbone; eval-mode dropout == identity).
    x = x_ref[...]

    # t1 = f1(x) = x @ W1^T + b1 ; bf16 MXU operands, f32 accumulation.
    # Padded class columns of W1^T are zero and b1 is -1e30 there -> exp == 0.
    t1 = jnp.dot(x, w1t_ref[...], preferred_element_type=jnp.float32) + b1_ref[...]

    # softmax(t1, dim=1) in f32 (full 128-lane vregs, no masked lanes).
    m1 = jnp.max(t1, axis=1, keepdims=True)
    e1 = jnp.exp(t1 - m1)
    y_hat = e1 * pl.reciprocal(jnp.sum(e1, axis=1, keepdims=True), approx=True)

    # t2 = l1(y_hat) = y_hat @ W2^T (no bias). Padded rows of W2^T see y_hat == 0;
    # padded output columns are re-masked to -1e30 before the second softmax.
    t2 = (jnp.dot(y_hat.astype(w2t_ref.dtype), w2t_ref[...],
                  preferred_element_type=jnp.float32)
          + mask2_ref[...])

    m2 = jnp.max(t2, axis=1, keepdims=True)
    e2 = jnp.exp(t2 - m2)
    y_hat_slash = e2 * pl.reciprocal(jnp.sum(e2, axis=1, keepdims=True), approx=True)

    y_ref[...] = y_hat.astype(y_ref.dtype)
    ylab_ref[...] = y_hat_slash.astype(ylab_ref.dtype)


def prepare_head_params(w1, b1, w2, lane_pad=128):
    """One-time weight prep: transpose, pad class dim to a full lane tile, cast bf16.

    w1: (C, 2048), b1: (C,), w2: (C, C)  ->  (w1t, b1p, w2t, mask2, Cp)
    """
    C, F = w1.shape
    Cp = ((C + lane_pad - 1) // lane_pad) * lane_pad

    w1t = jnp.zeros((F, Cp), jnp.bfloat16).at[:, :C].set(
        jnp.transpose(w1).astype(jnp.bfloat16))
    # Bias carries the class-pad mask for t1: real classes get b1, padded get -1e30.
    b1p = jnp.full((1, Cp), _NEG_BIG, jnp.float32).at[0, :C].set(
        b1.astype(jnp.float32))
    w2t = jnp.zeros((Cp, Cp), jnp.bfloat16).at[:C, :C].set(
        jnp.transpose(w2).astype(jnp.bfloat16))
    # Additive mask for t2 (l1 has no bias): 0 for real classes, -1e30 for padded.
    mask2 = jnp.full((1, Cp), _NEG_BIG, jnp.float32).at[0, :C].set(0.0)
    return w1t, b1p, w2t, mask2, Cp


def experiment_model_head(x, w1t, b1p, w2t, mask2, num_classes, *, block_b=None):
    """x: (B, 2048) f32 features; prepared params from prepare_head_params.

    Returns dict(feature, y_, y_label) matching the PyTorch forward (eval mode).
    """
    B, F = x.shape
    Cp = w1t.shape[1]

    # Batch tile: single program at small B; tile + "parallel" grid at large B
    # so the work can shard across TensorCores (v7x). 512 rows of bf16 x plus the
    # resident (2048, 128) bf16 weights stay far under the 32 MiB scoped VMEM
    # default even with double buffering.
    if block_b is None:
        block_b = B if B <= 512 else 512

    xb = x.astype(jnp.bfloat16)

    y_pad, ylab_pad = pl.pallas_call(
        _head_kernel,
        out_shape=(
            jax.ShapeDtypeStruct((B, Cp), jnp.float32),
            jax.ShapeDtypeStruct((B, Cp), jnp.float32),
        ),
        grid_spec=pltpu.PrefetchScalarGridSpec(
            num_scalar_prefetch=0,
            grid=(pl.cdiv(B, block_b),),
            in_specs=[
                pl.BlockSpec((block_b, F), lambda i: (i, 0)),   # x tile
                pl.BlockSpec((F, Cp), lambda i: (0, 0)),         # W1^T (resident)
                pl.BlockSpec((1, Cp), lambda i: (0, 0)),         # b1 + pad mask
                pl.BlockSpec((Cp, Cp), lambda i: (0, 0)),        # W2^T (resident)
                pl.BlockSpec((1, Cp), lambda i: (0, 0)),         # t2 pad mask
            ],
            out_specs=(
                pl.BlockSpec((block_b, Cp), lambda i: (i, 0)),
                pl.BlockSpec((block_b, Cp), lambda i: (i, 0)),
            ),
        ),
        compiler_params=pltpu.CompilerParams(
            dimension_semantics=("parallel",)),
    )(xb, w1t, b1p, w2t, mask2)

    # Feature output is the identity passthrough (eval-mode dropout): returned
    # directly from the wrapper, never written back by the kernel.
    return dict(
        feature=x,
        y_=y_pad[:, :num_classes],
        y_label=ylab_pad[:, :num_classes],
    )


def _reference(x, w1, b1, w2):
    t1 = x @ w1.T + b1
    y = jax.nn.softmax(t1, axis=1)
    t2 = y @ w2.T
    yl = jax.nn.softmax(t2, axis=1)
    return dict(feature=x, y_=y, y_label=yl)


if __name__ == "__main__":
    num_classes = 10
    B = 2
    F = 512 * 4  # 2048, the ResNet101 flattened feature size

    key = jax.random.PRNGKey(0)
    kx, kw1, kb1, kw2 = jax.random.split(key, 4)

    # Deterministic "feature" input (stand-in for the ResNet101 output).
    x = jax.random.normal(kx, (B, F), dtype=jnp.float32)

    # Deterministic parameter init (PyTorch-Linear-style uniform bounds).
    bound1 = 1.0 / math.sqrt(F)
    w1 = jax.random.uniform(kw1, (num_classes, F), jnp.float32, -bound1, bound1)
    b1 = jax.random.uniform(kb1, (num_classes,), jnp.float32, -bound1, bound1)
    bound2 = 1.0 / math.sqrt(num_classes)
    w2 = jax.random.uniform(kw2, (num_classes, num_classes), jnp.float32,
                            -bound2, bound2)

    # One-time weight prep (transpose / pad / bf16); constants under jit.
    w1t, b1p, w2t, mask2, _ = prepare_head_params(w1, b1, w2)

    @jax.jit
    def run_head(x_in):
        return experiment_model_head(x_in, w1t, b1p, w2t, mask2, num_classes)

    out = run_head(x)
    jax.block_until_ready(out)

    ref = _reference(x, w1, b1, w2)
    # Tolerances account for bf16 matmul operands + approx reciprocal (f32 acc).
    assert jnp.array_equal(out["feature"], ref["feature"])
    assert jnp.allclose(out["y_"], ref["y_"], atol=1e-2, rtol=1e-2)
    assert jnp.allclose(out["y_label"], ref["y_label"], atol=1e-2, rtol=1e-2)
    assert bool(jnp.allclose(jnp.sum(out["y_"], axis=1), 1.0, atol=3e-3))
    assert bool(jnp.allclose(jnp.sum(out["y_label"], axis=1), 1.0, atol=3e-3))

    print("KERNEL_OK")
</pallas_src>

<mosaic_0001>
module attributes {stable_mosaic.version = 11 : i64} {
  func.func @_head_kernel(%arg0: i32, %arg1: memref<2x2048xbf16, #tpu.memory_space<vmem>>, %arg2: memref<2048x128xbf16, #tpu.memory_space<vmem>>, %arg3: memref<1x128xf32, #tpu.memory_space<vmem>>, %arg4: memref<128x128xbf16, #tpu.memory_space<vmem>>, %arg5: memref<1x128xf32, #tpu.memory_space<vmem>>, %arg6: memref<2x128xf32, #tpu.memory_space<vmem>>, %arg7: memref<2x128xf32, #tpu.memory_space<vmem>>) attributes {dimension_semantics = [#tpu.dimension_semantics<parallel>], iteration_bounds = array<i64: 1>, scalar_prefetch = 0 : i64, scratch_operands = 0 : i64, tpu.core_type = #tpu.core_type<tc>, window_params = [{transform_indices = @transform_0, window_bounds = array<i64: 2, 2048>}, {pipeline_mode = #tpu.pipeline_mode<synchronous>, transform_indices = @transform_1, window_bounds = array<i64: 2048, 128>}, {pipeline_mode = #tpu.pipeline_mode<synchronous>, transform_indices = @transform_2, window_bounds = array<i64: 1, 128>}, {pipeline_mode = #tpu.pipeline_mode<synchronous>, transform_indices = @transform_3, window_bounds = array<i64: 128, 128>}, {pipeline_mode = #tpu.pipeline_mode<synchronous>, transform_indices = @transform_4, window_bounds = array<i64: 1, 128>}, {transform_indices = @transform_5, window_bounds = array<i64: 2, 128>}, {transform_indices = @transform_6, window_bounds = array<i64: 2, 128>}]} {
    %c0 = arith.constant 0 : index
    %c0_0 = arith.constant 0 : index
    %0 = vector.load %arg1[%c0, %c0_0] : memref<2x2048xbf16, #tpu.memory_space<vmem>>, vector<2x2048xbf16>
    %c0_1 = arith.constant 0 : index
    %c0_2 = arith.constant 0 : index
    %1 = vector.load %arg2[%c0_1, %c0_2] : memref<2048x128xbf16, #tpu.memory_space<vmem>>, vector<2048x128xbf16>
    %cst = arith.constant dense<0.000000e+00> : vector<2x128xf32>
    %2 = tpu.matmul %0, %1, %cst {dimension_numbers = #tpu.dot_dimension_numbers<[1], [0], [0], [1], [0, 0, 1, 1], [], []>} : vector<2x2048xbf16>, vector<2048x128xbf16>, vector<2x128xf32> -> vector<2x128xf32>
    %c0_3 = arith.constant 0 : index
    %c0_4 = arith.constant 0 : index
    %3 = vector.load %arg3[%c0_3, %c0_4] : memref<1x128xf32, #tpu.memory_space<vmem>>, vector<1x128xf32>
    %4 = vector.broadcast %3 : vector<1x128xf32> to vector<2x128xf32>
    %5 = arith.addf %2, %4 : vector<2x128xf32>
    %cst_5 = arith.constant dense<0xFF800000> : vector<2xf32>
    %6 = vector.multi_reduction <maximumf>, %5, %cst_5 [1] : vector<2x128xf32> to vector<2xf32>
    %7 = vector.shape_cast %6 : vector<2xf32> to vector<2x1xf32>
    %8 = vector.broadcast %7 : vector<2x1xf32> to vector<2x128xf32>
    %9 = arith.subf %5, %8 : vector<2x128xf32>
    %10 = math.exp %9 : vector<2x128xf32>
    %cst_6 = arith.constant dense<0.000000e+00> : vector<2xf32>
    %11 = vector.multi_reduction <add>, %10, %cst_6 [1] : vector<2x128xf32> to vector<2xf32>
    %12 = vector.shape_cast %11 : vector<2xf32> to vector<2x1xf32>
    %13 = tpu.reciprocal %12 {approx = true} : vector<2x1xf32> -> vector<2x1xf32>
    %14 = vector.broadcast %13 : vector<2x1xf32> to vector<2x128xf32>
    %15 = arith.mulf %10, %14 : vector<2x128xf32>
    %16 = arith.truncf %15 : vector<2x128xf32> to vector<2x128xbf16>
    %c0_7 = arith.constant 0 : index
    %c0_8 = arith.constant 0 : index
    %17 = vector.load %arg4[%c0_7, %c0_8] : memref<128x128xbf16, #tpu.memory_space<vmem>>, vector<128x128xbf16>
    %cst_9 = arith.constant dense<0.000000e+00> : vector<2x128xf32>
    %18 = tpu.matmul %16, %17, %cst_9 {dimension_numbers = #tpu.dot_dimension_numbers<[1], [0], [0], [1], [0, 0, 1, 1], [], []>} : vector<2x128xbf16>, vector<128x128xbf16>, vector<2x128xf32> -> vector<2x128xf32>
    %c0_10 = arith.constant 0 : index
    %c0_11 = arith.constant 0 : index
    %19 = vector.load %arg5[%c0_10, %c0_11] : memref<1x128xf32, #tpu.memory_space<vmem>>, vector<1x128xf32>
    %20 = vector.broadcast %19 : vector<1x128xf32> to vector<2x128xf32>
    %21 = arith.addf %18, %20 : vector<2x128xf32>
    %cst_12 = arith.constant dense<0xFF800000> : vector<2xf32>
    %22 = vector.multi_reduction <maximumf>, %21, %cst_12 [1] : vector<2x128xf32> to vector<2xf32>
    %23 = vector.shape_cast %22 : vector<2xf32> to vector<2x1xf32>
    %24 = vector.broadcast %23 : vector<2x1xf32> to vector<2x128xf32>
    %25 = arith.subf %21, %24 : vector<2x128xf32>
    %26 = math.exp %25 : vector<2x128xf32>
    %cst_13 = arith.constant dense<0.000000e+00> : vector<2xf32>
    %27 = vector.multi_reduction <add>, %26, %cst_13 [1] : vector<2x128xf32> to vector<2xf32>
    %28 = vector.shape_cast %27 : vector<2xf32> to vector<2x1xf32>
    %29 = tpu.reciprocal %28 {approx = true} : vector<2x1xf32> -> vector<2x1xf32>
    %30 = vector.broadcast %29 : vector<2x1xf32> to vector<2x128xf32>
    %31 = arith.mulf %26, %30 : vector<2x128xf32>
    %c0_14 = arith.constant 0 : index
    %c0_15 = arith.constant 0 : index
    %32 = vector.load %arg6[%c0_14, %c0_15] : memref<2x128xf32, #tpu.memory_space<vmem>>, vector<2x128xf32>
    tpu.vector_store %arg6[%c0_14, %c0_15], %15 {strides = array<i32>} : memref<2x128xf32, #tpu.memory_space<vmem>>, vector<2x128xf32>,
    %c0_16 = arith.constant 0 : index
    %c0_17 = arith.constant 0 : index
    %33 = vector.load %arg7[%c0_16, %c0_17] : memref<2x128xf32, #tpu.memory_space<vmem>>, vector<2x128xf32>
    tpu.vector_store %arg7[%c0_16, %c0_17], %31 {strides = array<i32>} : memref<2x128xf32, #tpu.memory_space<vmem>>, vector<2x128xf32>,
    return
  }
  func.func @transform_0(%arg0: i32) -> (i32, i32) {
    %c0_i32 = arith.constant 0 : i32
    %c0_i32_0 = arith.constant 0 : i32
    return %arg0, %c0_i32 : i32, i32
  }
  func.func @transform_1(%arg0: i32) -> (i32, i32) {
    %c0_i32 = arith.constant 0 : i32
    %c0_i32_0 = arith.constant 0 : i32
    %c0_i32_1 = arith.constant 0 : i32
    return %c0_i32, %c0_i32_0 : i32, i32
  }
  func.func @transform_2(%arg0: i32) -> (i32, i32) {
    %c0_i32 = arith.constant 0 : i32
    %c0_i32_0 = arith.constant 0 : i32
    %c0_i32_1 = arith.constant 0 : i32
    return %c0_i32, %c0_i32_0 : i32, i32
  }
  func.func @transform_3(%arg0: i32) -> (i32, i32) {
    %c0_i32 = arith.constant 0 : i32
    %c0_i32_0 = arith.constant 0 : i32
    %c0_i32_1 = arith.constant 0 : i32
    return %c0_i32, %c0_i32_0 : i32, i32
  }
  func.func @transform_4(%arg0: i32) -> (i32, i32) {
    %c0_i32 = arith.constant 0 : i32
    %c0_i32_0 = arith.constant 0 : i32
    %c0_i32_1 = arith.constant 0 : i32
    return %c0_i32, %c0_i32_0 : i32, i32
  }
  func.func @transform_5(%arg0: i32) -> (i32, i32) {
    %c0_i32 = arith.constant 0 : i32
    %c0_i32_0 = arith.constant 0 : i32
    return %arg0, %c0_i32 : i32, i32
  }
  func.func @transform_6(%arg0: i32) -> (i32, i32) {
    %c0_i32 = arith.constant 0 : i32
    %c0_i32_0 = arith.constant 0 : i32
    return %arg0, %c0_i32 : i32, i32
  }
}

</mosaic_0001>

<llo_original>
// kernel: run_head.1
$region0: #{run_head.1}
  #allocation0 [shape = 'u32[]', space=smem, size = 0x4, offset = 0x4, fixed_abs, tag = 'smem constant byte address 0x4 - core index']
  #allocation1 [shape = 'u32[144,128]{1,0:T(1,128)}', space=vmem, size = 0x12000, scoped, tag = 'internal scratch']
  %s0 = inlined_call_operand.vmem [shape: bf16[2,2048], index: 0, kind: input, shape index: {}]
  %s1 = inlined_call_operand.hbm [shape: bf16[2048,128], index: 1, kind: input, shape index: {}]
  %s2 = inlined_call_operand.vmem [shape: f32[1,128], index: 2, kind: input, shape index: {}]
  %s3 = inlined_call_operand.vmem [shape: bf16[128,128], index: 3, kind: input, shape index: {}]
  %s4 = inlined_call_operand.vmem [shape: f32[1,128], index: 4, kind: input, shape index: {}]
  %s5 = inlined_call_operand.hbm [shape: f32[2,128], index: 5, kind: output, shape index: {0}]
  %s6 = inlined_call_operand.hbm [shape: f32[2,128], index: 6, kind: output, shape index: {1}]
  %7 = xla_tuple %s5, %s6
  %s8 = sld [smem:[#allocation0]]
  $region42: #{run_head.1} parent=0
    _
  %s10 = ssub.s32 1, %s8
  %s11 = scalar_select 0, %s10, %s8
  $region1: #{run_head.1} parent=0
    #allocation2 [shape = 'u8[524288]{0}', space=vmem, size = 0x80000, scoped, tag = 'input window, operand 1, single buffered']
    #allocation3 [shape = 's32[1]{0}', space=sflag, size = 0x4, scoped, tag = 'scoped memory for run_head.1']
    #allocation4 [shape = 's32[1]{0}', space=sflag, size = 0x4, scoped, tag = 'scoped memory for run_head.1']
    #allocation5 [shape = 'u8[1024]{0}', space=vmem, size = 0x400, scoped, tag = 'output window, operand 0, single buffered']
    #allocation6 [shape = 'u8[1024]{0}', space=vmem, size = 0x400, scoped, tag = 'output window, operand 1, single buffered']
    #allocation7 [shape = 's32[1]{0}', space=sflag, size = 0x4, scoped, tag = 'scoped memory for run_head.1']
    %12 = vsyncpa [#allocation3], 0
    %13 = vsyncpa [#allocation4], 0
    %14 = vsyncpa [#allocation7], 0
    // Predicated region
    $region2: #{run_head.1} parent=1 // pred_check
      _
    $region3: #{run_head.1} parent=1 // pred_check_branch
      %16 = sbr.rel (0) target = $region5
    $region4: #{run_head.1} parent=1 // pred_region
      _
    $region5: #{run_head.1} parent=1 // pred_fallthru
      _
    // Predicated region
    $region6: #{run_head.1} parent=1 // pred_check
      _
    $region7: #{run_head.1} parent=1 // pred_check_branch
      %18 = sbr.rel (0) target = $region9
    $region8: #{run_head.1} parent=1 // pred_region
      %s20 = ssub.s32 16384, 16384
      %21 = vsyncadd [#allocation3], %s20
      %s22 = sshll.u32 [#allocation2], 4
      %s23 = int_to_ptr.vmem [resolvable:$true] %s22
      %28 = dma.hbm_to_vmem [thread:$0]  %s1, 16384, %s23, [#allocation3], 64, 64, 4
    $region9: #{run_head.1} parent=1 // pred_fallthru
      _
    // Predicated region
    $region10: #{run_head.1} parent=1 // pred_check
      _
    $region11: #{run_head.1} parent=1 // pred_check_branch
      %30 = sbr.rel (0) target = $region13
    $region12: #{run_head.1} parent=1 // pred_region
      _
    $region13: #{run_head.1} parent=1 // pred_fallthru
      _
    // Predicated region
    $region14: #{run_head.1} parent=1 // pred_check
      _
    $region15: #{run_head.1} parent=1 // pred_check_branch
      %32 = sbr.rel (0) target = $region17
    $region16: #{run_head.1} parent=1 // pred_region
      _
    $region17: #{run_head.1} parent=1 // pred_fallthru
      _
    // Predicated region
    $region18: #{run_head.1} parent=1 // pred_check
      _
    $region19: #{run_head.1} parent=1 // pred_check_branch
      %34 = sbr.rel (0) target = $region21
    $region20: #{run_head.1} parent=1 // pred_region
      _
    $region21: #{run_head.1} parent=1 // pred_fallthru
      _
    // Predicated region
    $region22: #{run_head.1} parent=1 // pred_check
      _
    $region23: #{run_head.1} parent=1 // pred_check_branch
      %36 = sbr.rel (0) target = $region25
    $region24: #{run_head.1} parent=1 // pred_region
      %37 = dma.done [#allocation3], 16384
    $region25: #{run_head.1} parent=1 // pred_fallthru
      _
    %v39 = vld [vmem:[%s0] sm:$0xff]
    %v40 = vld [vmem:[%s0 + $0x8] sm:$0xff]
    %v41 = vld [vmem:[#allocation2] sm:$0xf]
    %v42 = vld [vmem:[#allocation2 + $0x4] sm:$0xf]
    %v43 = vld [vmem:[#allocation2 + $0x8] sm:$0xf]
    %v44 = vld [vmem:[#allocation2 + $0xc] sm:$0xf]
    %v45 = vld [vmem:[#allocation2 + $0x10] sm:$0xf]
    %v46 = vld [vmem:[#allocation2 + $0x14] sm:$0xf]
    %v47 = vld [vmem:[#allocation2 + $0x18] sm:$0xf]
    %v48 = vld [vmem:[#allocation2 + $0x1c] sm:$0xf]
    %v49 = vld [vmem:[#allocation2 + $0x20] sm:$0xf]
    %v50 = vld [vmem:[#allocation2 + $0x24] sm:$0xf]
    %v51 = vld [vmem:[#allocation2 + $0x28] sm:$0xf]
    %v52 = vld [vmem:[#allocation2 + $0x2c] sm:$0xf]
    %v53 = vld [vmem:[#allocation2 + $0x30] sm:$0xf]
    %v54 = vld [vmem:[#allocation2 + $0x34] sm:$0xf]
    %v55 = vld [vmem:[#allocation2 + $0x38] sm:$0xf]
    %v56 = vld [vmem:[#allocation2 + $0x3c] sm:$0xf]
    %v57 = vld [vmem:[#allocation2 + $0x40] sm:$0xf]
    %v58 = vld [vmem:[#allocation2 + $0x44] sm:$0xf]
    %v59 = vld [vmem:[#allocation2 + $0x48] sm:$0xf]
    %v60 = vld [vmem:[#allocation2 + $0x4c] sm:$0xf]
    %v61 = vld [vmem:[#allocation2 + $0x50] sm:$0xf]
    %v62 = vld [vmem:[#allocation2 + $0x54] sm:$0xf]
    %v63 = vld [vmem:[#allocation2 + $0x58] sm:$0xf]
    %v64 = vld [vmem:[#allocation2 + $0x5c] sm:$0xf]
    %v65 = vld [vmem:[#allocation2 + $0x60] sm:$0xf]
    %v66 = vld [vmem:[#allocation2 + $0x64] sm:$0xf]
    %v67 = vld [vmem:[#allocation2 + $0x68] sm:$0xf]
    %v68 = vld [vmem:[#allocation2 + $0x6c] sm:$0xf]
    %v69 = vld [vmem:[#allocation2 + $0x70] sm:$0xf]
    %v70 = vld [vmem:[#allocation2 + $0x74] sm:$0xf]
    %v71 = vld [vmem:[#allocation2 + $0x78] sm:$0xf]
    %v72 = vld [vmem:[#allocation2 + $0x7c] sm:$0xf]
    %v73 = vld [vmem:[#allocation2 + $0x80] sm:$0xf]
    %v74 = vld [vmem:[#allocation2 + $0x84] sm:$0xf]
    %v75 = vld [vmem:[#allocation2 + $0x88] sm:$0xf]
    %v76 = vld [vmem:[#allocation2 + $0x8c] sm:$0xf]
    %v77 = vld [vmem:[#allocation2 + $0x90] sm:$0xf]
    %v78 = vld [vmem:[#allocation2 + $0x94] sm:$0xf]
    %v79 = vld [vmem:[#allocation2 + $0x98] sm:$0xf]
    %v80 = vld [vmem:[#allocation2 + $0x9c] sm:$0xf]
    %v81 = vld [vmem:[#allocation2 + $0xa0] sm:$0xf]
    %v82 = vld [vmem:[#allocation2 + $0xa4] sm:$0xf]
    %v83 = vld [vmem:[#allocation2 + $0xa8] sm:$0xf]
    %v84 = vld [vmem:[#allocation2 + $0xac] sm:$0xf]
    %v85 = vld [vmem:[#allocation2 + $0xb0] sm:$0xf]
    %v86 = vld [vmem:[#allocation2 + $0xb4] sm:$0xf]
    %v87 = vld [vmem:[#allocation2 + $0xb8] sm:$0xf]
    %v88 = vld [vmem:[#allocation2 + $0xbc] sm:$0xf]
    %v89 = vld [vmem:[#allocation2 + $0xc0] sm:$0xf]
    %v90 = vld [vmem:[#allocation2 + $0xc4] sm:$0xf]
    %v91 = vld [vmem:[#allocation2 + $0xc8] sm:$0xf]
    %v92 = vld [vmem:[#allocation2 + $0xcc] sm:$0xf]
    %v93 = vld [vmem:[#allocation2 + $0xd0] sm:$0xf]
    %v94 = vld [vmem:[#allocation2 + $0xd4] sm:$0xf]
    %v95 = vld [vmem:[#allocation2 + $0xd8] sm:$0xf]
    %v96 = vld [vmem:[#allocation2 + $0xdc] sm:$0xf]
    %v97 = vld [vmem:[#allocation2 + $0xe0] sm:$0xf]
    %v98 = vld [vmem:[#allocation2 + $0xe4] sm:$0xf]
    %v99 = vld [vmem:[#allocation2 + $0xe8] sm:$0xf]
    %v100 = vld [vmem:[#allocation2 + $0xec] sm:$0xf]
    %v101 = vld [vmem:[#allocation2 + $0xf0] sm:$0xf]
    %v102 = vld [vmem:[#allocation2 + $0xf4] sm:$0xf]
    %v103 = vld [vmem:[#allocation2 + $0xf8] sm:$0xf]
    %v104 = vld [vmem:[#allocation2 + $0xfc] sm:$0xf]
    %v105 = vld [vmem:[#allocation2 + $0x100] sm:$0xf]
    %v106 = vld [vmem:[#allocation2 + $0x104] sm:$0xf]
    %v107 = vld [vmem:[#allocation2 + $0x108] sm:$0xf]
    %v108 = vld [vmem:[#allocation2 + $0x10c] sm:$0xf]
    %v109 = vld [vmem:[#allocation2 + $0x110] sm:$0xf]
    %v110 = vld [vmem:[#allocation2 + $0x114] sm:$0xf]
    %v111 = vld [vmem:[#allocation2 + $0x118] sm:$0xf]
    %v112 = vld [vmem:[#allocation2 + $0x11c] sm:$0xf]
    %v113 = vld [vmem:[#allocation2 + $0x120] sm:$0xf]
    %v114 = vld [vmem:[#allocation2 + $0x124] sm:$0xf]
    %v115 = vld [vmem:[#allocation2 + $0x128] sm:$0xf]
    %v116 = vld [vmem:[#allocation2 + $0x12c] sm:$0xf]
    %v117 = vld [vmem:[#allocation2 + $0x130] sm:$0xf]
    %v118 = vld [vmem:[#allocation2 + $0x134] sm:$0xf]
    %v119 = vld [vmem:[#allocation2 + $0x138] sm:$0xf]
    %v120 = vld [vmem:[#allocation2 + $0x13c] sm:$0xf]
    %v121 = vld [vmem:[#allocation2 + $0x140] sm:$0xf]
    %v122 = vld [vmem:[#allocation2 + $0x144] sm:$0xf]
    %v123 = vld [vmem:[#allocation2 + $0x148] sm:$0xf]
    %v124 = vld [vmem:[#allocation2 + $0x14c] sm:$0xf]
    %v125 = vld [vmem:[#allocation2 + $0x150] sm:$0xf]
    %v126 = vld [vmem:[#allocation2 + $0x154] sm:$0xf]
    %v127 = vld [vmem:[#allocation2 + $0x158] sm:$0xf]
    %v128 = vld [vmem:[#allocation2 + $0x15c] sm:$0xf]
    %v129 = vld [vmem:[#allocation2 + $0x160] sm:$0xf]
    %v130 = vld [vmem:[#allocation2 + $0x164] sm:$0xf]
    %v131 = vld [vmem:[#allocation2 + $0x168] sm:$0xf]
    %v132 = vld [vmem:[#allocation2 + $0x16c] sm:$0xf]
    %v133 = vld [vmem:[#allocation2 + $0x170] sm:$0xf]
    %v134 = vld [vmem:[#allocation2 + $0x174] sm:$0xf]
    %v135 = vld [vmem:[#allocation2 + $0x178] sm:$0xf]
    %v136 = vld [vmem:[#allocation2 + $0x17c] sm:$0xf]
    %v137 = vld [vmem:[#allocation2 + $0x180] sm:$0xf]
    %v138 = vld [vmem:[#allocation2 + $0x184] sm:$0xf]
    %v139 = vld [vmem:[#allocation2 + $0x188] sm:$0xf]
    %v140 = vld [vmem:[#allocation2 + $0x18c] sm:$0xf]
    %v141 = vld [vmem:[#allocation2 + $0x190] sm:$0xf]
    %v142 = vld [vmem:[#allocation2 + $0x194] sm:$0xf]
    %v143 = vld [vmem:[#allocation2 + $0x198] sm:$0xf]
    %v144 = vld [vmem:[#allocation2 + $0x19c] sm:$0xf]
    %v145 = vld [vmem:[#allocation2 + $0x1a0] sm:$0xf]
    %v146 = vld [vmem:[#allocation2 + $0x1a4] sm:$0xf]
    %v147 = vld [vmem:[#allocation2 + $0x1a8] sm:$0xf]
    %v148 = vld [vmem:[#allocation2 + $0x1ac] sm:$0xf]
    %v149 = vld [vmem:[#allocation2 + $0x1b0] sm:$0xf]
    %v150 = vld [vmem:[#allocation2 + $0x1b4] sm:$0xf]
    %v151 = vld [vmem:[#allocation2 + $0x1b8] sm:$0xf]
    %v152 = vld [vmem:[#allocation2 + $0x1bc] sm:$0xf]
    %v153 = vld [vmem:[#allocation2 + $0x1c0] sm:$0xf]
    %v154 = vld [vmem:[#allocation2 + $0x1c4] sm:$0xf]
    %v155 = vld [vmem:[#allocation2 + $0x1c8] sm:$0xf]
    %v156 = vld [vmem:[#allocation2 + $0x1cc] sm:$0xf]
    %v157 = vld [vmem:[#allocation2 + $0x1d0] sm:$0xf]
    %v158 = vld [vmem:[#allocation2 + $0x1d4] sm:$0xf]
    %v159 = vld [vmem:[#allocation2 + $0x1d8] sm:$0xf]
    %v160 = vld [vmem:[#allocation2 + $0x1dc] sm:$0xf]
    %v161 = vld [vmem:[#allocation2 + $0x1e0] sm:$0xf]
    %v162 = vld [vmem:[#allocation2 + $0x1e4] sm:$0xf]
    %v163 = vld [vmem:[#allocation2 + $0x1e8] sm:$0xf]
    %v164 = vld [vmem:[#allocation2 + $0x1ec] sm:$0xf]
    %v165 = vld [vmem:[#allocation2 + $0x1f0] sm:$0xf]
    %v166 = vld [vmem:[#allocation2 + $0x1f4] sm:$0xf]
    %v167 = vld [vmem:[#allocation2 + $0x1f8] sm:$0xf]
    %v168 = vld [vmem:[#allocation2 + $0x1fc] sm:$0xf]
    %v169 = vld [vmem:[#allocation2 + $0x200] sm:$0xf]
    %v170 = vld [vmem:[#allocation2 + $0x204] sm:$0xf]
    %v171 = vld [vmem:[#allocation2 + $0x208] sm:$0xf]
    %v172 = vld [vmem:[#allocation2 + $0x20c] sm:$0xf]
    %v173 = vld [vmem:[#allocation2 + $0x210] sm:$0xf]
    %v174 = vld [vmem:[#allocation2 + $0x214] sm:$0xf]
    %v175 = vld [vmem:[#allocation2 + $0x218] sm:$0xf]
    %v176 = vld [vmem:[#allocation2 + $0x21c] sm:$0xf]
    %v177 = vld [vmem:[#allocation2 + $0x220] sm:$0xf]
    %v178 = vld [vmem:[#allocation2 + $0x224] sm:$0xf]
    %v179 = vld [vmem:[#allocation2 + $0x228] sm:$0xf]
    %v180 = vld [vmem:[#allocation2 + $0x22c] sm:$0xf]
    %v181 = vld [vmem:[#allocation2 + $0x230] sm:$0xf]
    %v182 = vld [vmem:[#allocation2 + $0x234] sm:$0xf]
    %v183 = vld [vmem:[#allocation2 + $0x238] sm:$0xf]
    %v184 = vld [vmem:[#allocation2 + $0x23c] sm:$0xf]
    %v185 = vld [vmem:[#allocation2 + $0x240] sm:$0xf]
    %v186 = vld [vmem:[#allocation2 + $0x244] sm:$0xf]
    %v187 = vld [vmem:[#allocation2 + $0x248] sm:$0xf]
    %v188 = vld [vmem:[#allocation2 + $0x24c] sm:$0xf]
    %v189 = vld [vmem:[#allocation2 + $0x250] sm:$0xf]
    %v190 = vld [vmem:[#allocation2 + $0x254] sm:$0xf]
    %v191 = vld [vmem:[#allocation2 + $0x258] sm:$0xf]
    %v192 = vld [vmem:[#allocation2 + $0x25c] sm:$0xf]
    %v193 = vld [vmem:[#allocation2 + $0x260] sm:$0xf]
    %v194 = vld [vmem:[#allocation2 + $0x264] sm:$0xf]
    %v195 = vld [vmem:[#allocation2 + $0x268] sm:$0xf]
    %v196 = vld [vmem:[#allocation2 + $0x26c] sm:$0xf]
    %v197 = vld [vmem:[#allocation2 + $0x270] sm:$0xf]
    %v198 = vld [vmem:[#allocation2 + $0x274] sm:$0xf]
    %v199 = vld [vmem:[#allocation2 + $0x278] sm:$0xf]
    %v200 = vld [vmem:[#allocation2 + $0x27c] sm:$0xf]
    %v201 = vld [vmem:[#allocation2 + $0x280] sm:$0xf]
    %v202 = vld [vmem:[#allocation2 + $0x284] sm:$0xf]
    %v203 = vld [vmem:[#allocation2 + $0x288] sm:$0xf]
    %v204 = vld [vmem:[#allocation2 + $0x28c] sm:$0xf]
    %v205 = vld [vmem:[#allocation2 + $0x290] sm:$0xf]
    %v206 = vld [vmem:[#allocation2 + $0x294] sm:$0xf]
    %v207 = vld [vmem:[#allocation2 + $0x298] sm:$0xf]
    %v208 = vld [vmem:[#allocation2 + $0x29c] sm:$0xf]
    %v209 = vld [vmem:[#allocation2 + $0x2a0] sm:$0xf]
    %v210 = vld [vmem:[#allocation2 + $0x2a4] sm:$0xf]
    %v211 = vld [vmem:[#allocation2 + $0x2a8] sm:$0xf]
    %v212 = vld [vmem:[#allocation2 + $0x2ac] sm:$0xf]
    %v213 = vld [vmem:[#allocation2 + $0x2b0] sm:$0xf]
    %v214 = vld [vmem:[#allocation2 + $0x2b4] sm:$0xf]
    %v215 = vld [vmem:[#allocation2 + $0x2b8] sm:$0xf]
    %v216 = vld [vmem:[#allocation2 + $0x2bc] sm:$0xf]
    %v217 = vld [vmem:[#allocation2 + $0x2c0] sm:$0xf]
    %v218 = vld [vmem:[#allocation2 + $0x2c4] sm:$0xf]
    %v219 = vld [vmem:[#allocation2 + $0x2c8] sm:$0xf]
    %v220 = vld [vmem:[#allocation2 + $0x2cc] sm:$0xf]
    %v221 = vld [vmem:[#allocation2 + $0x2d0] sm:$0xf]
    %v222 = vld [vmem:[#allocation2 + $0x2d4] sm:$0xf]
    %v223 = vld [vmem:[#allocation2 + $0x2d8] sm:$0xf]
    %v224 = vld [vmem:[#allocation2 + $0x2dc] sm:$0xf]
    %v225 = vld [vmem:[#allocation2 + $0x2e0] sm:$0xf]
    %v226 = vld [vmem:[#allocation2 + $0x2e4] sm:$0xf]
    %v227 = vld [vmem:[#allocation2 + $0x2e8] sm:$0xf]
    %v228 = vld [vmem:[#allocation2 + $0x2ec] sm:$0xf]
    %v229 = vld [vmem:[#allocation2 + $0x2f0] sm:$0xf]
    %v230 = vld [vmem:[#allocation2 + $0x2f4] sm:$0xf]
    %v231 = vld [vmem:[#allocation2 + $0x2f8] sm:$0xf]
    %v232 = vld [vmem:[#allocation2 + $0x2fc] sm:$0xf]
    %v233 = vld [vmem:[#allocation2 + $0x300] sm:$0xf]
    %v234 = vld [vmem:[#allocation2 + $0x304] sm:$0xf]
    %v235 = vld [vmem:[#allocation2 + $0x308] sm:$0xf]
    %v236 = vld [vmem:[#allocation2 + $0x30c] sm:$0xf]
    %v237 = vld [vmem:[#allocation2 + $0x310] sm:$0xf]
    %v238 = vld [vmem:[#allocation2 + $0x314] sm:$0xf]
    %v239 = vld [vmem:[#allocation2 + $0x318] sm:$0xf]
    %v240 = vld [vmem:[#allocation2 + $0x31c] sm:$0xf]
    %v241 = vld [vmem:[#allocation2 + $0x320] sm:$0xf]
    %v242 = vld [vmem:[#allocation2 + $0x324] sm:$0xf]
    %v243 = vld [vmem:[#allocation2 + $0x328] sm:$0xf]
    %v244 = vld [vmem:[#allocation2 + $0x32c] sm:$0xf]
    %v245 = vld [vmem:[#allocation2 + $0x330] sm:$0xf]
    %v246 = vld [vmem:[#allocation2 + $0x334] sm:$0xf]
    %v247 = vld [vmem:[#allocation2 + $0x338] sm:$0xf]
    %v248 = vld [vmem:[#allocation2 + $0x33c] sm:$0xf]
    %v249 = vld [vmem:[#allocation2 + $0x340] sm:$0xf]
    %v250 = vld [vmem:[#allocation2 + $0x344] sm:$0xf]
    %v251 = vld [vmem:[#allocation2 + $0x348] sm:$0xf]
    %v252 = vld [vmem:[#allocation2 + $0x34c] sm:$0xf]
    %v253 = vld [vmem:[#allocation2 + $0x350] sm:$0xf]
    %v254 = vld [vmem:[#allocation2 + $0x354] sm:$0xf]
    %v255 = vld [vmem:[#allocation2 + $0x358] sm:$0xf]
    %v256 = vld [vmem:[#allocation2 + $0x35c] sm:$0xf]
    %v257 = vld [vmem:[#allocation2 + $0x360] sm:$0xf]
    %v258 = vld [vmem:[#allocation2 + $0x364] sm:$0xf]
    %v259 = vld [vmem:[#allocation2 + $0x368] sm:$0xf]
    %v260 = vld [vmem:[#allocation2 + $0x36c] sm:$0xf]
    %v261 = vld [vmem:[#allocation2 + $0x370] sm:$0xf]
    %v262 = vld [vmem:[#allocation2 + $0x374] sm:$0xf]
    %v263 = vld [vmem:[#allocation2 + $0x378] sm:$0xf]
    %v264 = vld [vmem:[#allocation2 + $0x37c] sm:$0xf]
    %v265 = vld [vmem:[#allocation2 + $0x380] sm:$0xf]
    %v266 = vld [vmem:[#allocation2 + $0x384] sm:$0xf]
    %v267 = vld [vmem:[#allocation2 + $0x388] sm:$0xf]
    %v268 = vld [vmem:[#allocation2 + $0x38c] sm:$0xf]
    %v269 = vld [vmem:[#allocation2 + $0x390] sm:$0xf]
    %v270 = vld [vmem:[#allocation2 + $0x394] sm:$0xf]
    %v271 = vld [vmem:[#allocation2 + $0x398] sm:$0xf]
    %v272 = vld [vmem:[#allocation2 + $0x39c] sm:$0xf]
    %v273 = vld [vmem:[#allocation2 + $0x3a0] sm:$0xf]
    %v274 = vld [vmem:[#allocation2 + $0x3a4] sm:$0xf]
    %v275 = vld [vmem:[#allocation2 + $0x3a8] sm:$0xf]
    %v276 = vld [vmem:[#allocation2 + $0x3ac] sm:$0xf]
    %v277 = vld [vmem:[#allocation2 + $0x3b0] sm:$0xf]
    %v278 = vld [vmem:[#allocation2 + $0x3b4] sm:$0xf]
    %v279 = vld [vmem:[#allocation2 + $0x3b8] sm:$0xf]
    %v280 = vld [vmem:[#allocation2 + $0x3bc] sm:$0xf]
    %v281 = vld [vmem:[#allocation2 + $0x3c0] sm:$0xf]
    %v282 = vld [vmem:[#allocation2 + $0x3c4] sm:$0xf]
    %v283 = vld [vmem:[#allocation2 + $0x3c8] sm:$0xf]
    %v284 = vld [vmem:[#allocation2 + $0x3cc] sm:$0xf]
    %v285 = vld [vmem:[#allocation2 + $0x3d0] sm:$0xf]
    %v286 = vld [vmem:[#allocation2 + $0x3d4] sm:$0xf]
    %v287 = vld [vmem:[#allocation2 + $0x3d8] sm:$0xf]
    %v288 = vld [vmem:[#allocation2 + $0x3dc] sm:$0xf]
    %v289 = vld [vmem:[#allocation2 + $0x3e0] sm:$0xf]
    %v290 = vld [vmem:[#allocation2 + $0x3e4] sm:$0xf]
    %v291 = vld [vmem:[#allocation2 + $0x3e8] sm:$0xf]
    %v292 = vld [vmem:[#allocation2 + $0x3ec] sm:$0xf]
    %v293 = vld [vmem:[#allocation2 + $0x3f0] sm:$0xf]
    %v294 = vld [vmem:[#allocation2 + $0x3f4] sm:$0xf]
    %v295 = vld [vmem:[#allocation2 + $0x3f8] sm:$0xf]
    %v296 = vld [vmem:[#allocation2 + $0x3fc] sm:$0xf]
    %v297 = vld [vmem:[%s2] sm:$0x1]
    %v299 = vlaneseq
    %v300 = vshrl.u32 %v299, 7
    %v301 = vsub.s32 0, %v300
    %v302 = vrot.slane %v297, %v301
    %v306 = vcombine.high %v39, %v39
    %v308 = vunpack.c.l.s4 1966171168
    %v309 = vunpack.c.0.s8 %v308
    %v310 = vlaneseq
    %v311 = vshrl.u32 %v310, 7
    %v312 = vsub.s32 %v309, %v311
    %v313 = vrot.slane %v39, %v312
    %v315 = vunpack.c.l.s4 1966171168
    %v316 = vunpack.c.0.s8 %v315
    %v317 = vlaneseq
    %v318 = vshrl.u32 %v317, 7
    %v319 = vsub.s32 %v316, %v318
    %v320 = vrot.slane %v306, %v319
    %v321 = vcombine.high %v313, %v313
    %v322 = vcombine.high %v320, %v320
    %v324 = vunpack.c.l.s4 1966171168
    %v325 = vunpack.c.0.s8 %v324
    %v326 = vlaneseq
    %v327 = vshrl.u32 %v326, 7
    %v328 = vsub.s32 %v325, %v327
    %v329 = vrot.slane %v313, %v328
    %v331 = vunpack.c.l.s4 1966171168
    %v332 = vunpack.c.0.s8 %v331
    %v333 = vlaneseq
    %v334 = vshrl.u32 %v333, 7
    %v335 = vsub.s32 %v332, %v334
    %v336 = vrot.slane %v320, %v335
    %v338 = vunpack.c.l.s4 1966171168
    %v339 = vunpack.c.0.s8 %v338
    %v340 = vlaneseq
    %v341 = vshrl.u32 %v340, 7
    %v342 = vsub.s32 %v339, %v341
    %v343 = vrot.slane %v321, %v342
    %v345 = vunpack.c.l.s4 1966171168
    %v346 = vunpack.c.0.s8 %v345
    %v347 = vlaneseq
    %v348 = vshrl.u32 %v347, 7
    %v349 = vsub.s32 %v346, %v348
    %v350 = vrot.slane %v322, %v349
    %v351 = vcombine.high %v329, %v329
    %v352 = vcombine.high %v336, %v336
    %v353 = vcombine.high %v343, %v343
    %v354 = vcombine.high %v350, %v350
    %v355 = vcombine.high %v40, %v40
    %v357 = vunpack.c.l.s4 1966171168
    %v358 = vunpack.c.0.s8 %v357
    %v359 = vlaneseq
    %v360 = vshrl.u32 %v359, 7
    %v361 = vsub.s32 %v358, %v360
    %v362 = vrot.slane %v40, %v361
    %v364 = vunpack.c.l.s4 1966171168
    %v365 = vunpack.c.0.s8 %v364
    %v366 = vlaneseq
    %v367 = vshrl.u32 %v366, 7
    %v368 = vsub.s32 %v365, %v367
    %v369 = vrot.slane %v355, %v368
    %v370 = vcombine.high %v362, %v362
    %v371 = vcombine.high %v369, %v369
    %v373 = vunpack.c.l.s4 1966171168
    %v374 = vunpack.c.0.s8 %v373
    %v375 = vlaneseq
    %v376 = vshrl.u32 %v375, 7
    %v377 = vsub.s32 %v374, %v376
    %v378 = vrot.slane %v362, %v377
    %v380 = vunpack.c.l.s4 1966171168
    %v381 = vunpack.c.0.s8 %v380
    %v382 = vlaneseq
    %v383 = vshrl.u32 %v382, 7
    %v384 = vsub.s32 %v381, %v383
    %v385 = vrot.slane %v369, %v384
    %v387 = vunpack.c.l.s4 1966171168
    %v388 = vunpack.c.0.s8 %v387
    %v389 = vlaneseq
    %v390 = vshrl.u32 %v389, 7
    %v391 = vsub.s32 %v388, %v390
    %v392 = vrot.slane %v370, %v391
    %v394 = vunpack.c.l.s4 1966171168
    %v395 = vunpack.c.0.s8 %v394
    %v396 = vlaneseq
    %v397 = vshrl.u32 %v396, 7
    %v398 = vsub.s32 %v395, %v397
    %v399 = vrot.slane %v371, %v398
    %v400 = vcombine.high %v378, %v378
    %v401 = vcombine.high %v385, %v385
    %v402 = vcombine.high %v392, %v392
    %v403 = vcombine.high %v399, %v399
    %v676 = vunpack.c.l.b16 %v41
    %v677 = vunpack.c.l.b16 %v42
    %v678 = vunpack.c.l.b16 %v43
    %v679 = vunpack.c.l.b16 %v44
    %v680 = vunpack.c.l.b16 %v45
    %v681 = vunpack.c.l.b16 %v46
    %v682 = vunpack.c.l.b16 %v47
    %v683 = vunpack.c.l.b16 %v48
    %v684 = vunpack.c.l.b16 %v49
    %v685 = vunpack.c.l.b16 %v50
    %v686 = vunpack.c.l.b16 %v51
    %v687 = vunpack.c.l.b16 %v52
    %v688 = vunpack.c.l.b16 %v53
    %v689 = vunpack.c.l.b16 %v54
    %v690 = vunpack.c.l.b16 %v55
    %v691 = vunpack.c.l.b16 %v56
    %v692 = vunpack.c.l.b16 %v57
    %v693 = vunpack.c.l.b16 %v58
    %v694 = vunpack.c.l.b16 %v59
    %v695 = vunpack.c.l.b16 %v60
    %v696 = vunpack.c.l.b16 %v61
    %v697 = vunpack.c.l.b16 %v62
    %v698 = vunpack.c.l.b16 %v63
    %v699 = vunpack.c.l.b16 %v64
    %v700 = vunpack.c.l.b16 %v65
    %v701 = vunpack.c.l.b16 %v66
    %v702 = vunpack.c.l.b16 %v67
    %v703 = vunpack.c.l.b16 %v68
    %v704 = vunpack.c.l.b16 %v69
    %v705 = vunpack.c.l.b16 %v70
    %v706 = vunpack.c.l.b16 %v71
    %v707 = vunpack.c.l.b16 %v72
    %v708 = vunpack.c.l.b16 %v73
    %v709 = vunpack.c.l.b16 %v74
    %v710 = vunpack.c.l.b16 %v75
    %v711 = vunpack.c.l.b16 %v76
    %v712 = vunpack.c.l.b16 %v77
    %v713 = vunpack.c.l.b16 %v78
    %v714 = vunpack.c.l.b16 %v79
    %v715 = vunpack.c.l.b16 %v80
    %v716 = vunpack.c.l.b16 %v81
    %v717 = vunpack.c.l.b16 %v82
    %v718 = vunpack.c.l.b16 %v83
    %v719 = vunpack.c.l.b16 %v84
    %v720 = vunpack.c.l.b16 %v85
    %v721 = vunpack.c.l.b16 %v86
    %v722 = vunpack.c.l.b16 %v87
    %v723 = vunpack.c.l.b16 %v88
    %v724 = vunpack.c.l.b16 %v89
    %v725 = vunpack.c.l.b16 %v90
    %v726 = vunpack.c.l.b16 %v91
    %v727 = vunpack.c.l.b16 %v92
    %v728 = vunpack.c.l.b16 %v93
    %v729 = vunpack.c.l.b16 %v94
    %v730 = vunpack.c.l.b16 %v95
    %v731 = vunpack.c.l.b16 %v96
    %v732 = vunpack.c.l.b16 %v97
    %v733 = vunpack.c.l.b16 %v98
    %v734 = vunpack.c.l.b16 %v99
    %v735 = vunpack.c.l.b16 %v100
    %v736 = vunpack.c.l.b16 %v101
    %v737 = vunpack.c.l.b16 %v102
    %v738 = vunpack.c.l.b16 %v103
    %v739 = vunpack.c.l.b16 %v104
    %v740 = vunpack.c.l.b16 %v105
    %v741 = vunpack.c.l.b16 %v106
    %v742 = vunpack.c.l.b16 %v107
    %v743 = vunpack.c.l.b16 %v108
    %v744 = vunpack.c.l.b16 %v109
    %v745 = vunpack.c.l.b16 %v110
    %v746 = vunpack.c.l.b16 %v111
    %v747 = vunpack.c.l.b16 %v112
    %v748 = vunpack.c.l.b16 %v113
    %v749 = vunpack.c.l.b16 %v114
    %v750 = vunpack.c.l.b16 %v115
    %v751 = vunpack.c.l.b16 %v116
    %v752 = vunpack.c.l.b16 %v117
    %v753 = vunpack.c.l.b16 %v118
    %v754 = vunpack.c.l.b16 %v119
    %v755 = vunpack.c.l.b16 %v120
    %v756 = vunpack.c.l.b16 %v121
    %v757 = vunpack.c.l.b16 %v122
    %v758 = vunpack.c.l.b16 %v123
    %v759 = vunpack.c.l.b16 %v124
    %v760 = vunpack.c.l.b16 %v125
    %v761 = vunpack.c.l.b16 %v126
    %v762 = vunpack.c.l.b16 %v127
    %v763 = vunpack.c.l.b16 %v128
    %v764 = vunpack.c.l.b16 %v129
    %v765 = vunpack.c.l.b16 %v130
    %v766 = vunpack.c.l.b16 %v131
    %v767 = vunpack.c.l.b16 %v132
    %v768 = vunpack.c.l.b16 %v133
    %v769 = vunpack.c.l.b16 %v134
    %v770 = vunpack.c.l.b16 %v135
    %v771 = vunpack.c.l.b16 %v136
    %v772 = vunpack.c.l.b16 %v137
    %v773 = vunpack.c.l.b16 %v138
    %v774 = vunpack.c.l.b16 %v139
    %v775 = vunpack.c.l.b16 %v140
    %v776 = vunpack.c.l.b16 %v141
    %v777 = vunpack.c.l.b16 %v142
    %v778 = vunpack.c.l.b16 %v143
    %v779 = vunpack.c.l.b16 %v144
    %v780 = vunpack.c.l.b16 %v145
    %v781 = vunpack.c.l.b16 %v146
    %v782 = vunpack.c.l.b16 %v147
    %v783 = vunpack.c.l.b16 %v148
    %v784 = vunpack.c.l.b16 %v149
    %v785 = vunpack.c.l.b16 %v150
    %v786 = vunpack.c.l.b16 %v151
    %v787 = vunpack.c.l.b16 %v152
    %v788 = vunpack.c.l.b16 %v153
    %v789 = vunpack.c.l.b16 %v154
    %v790 = vunpack.c.l.b16 %v155
    %v791 = vunpack.c.l.b16 %v156
    %v792 = vunpack.c.l.b16 %v157
    %v793 = vunpack.c.l.b16 %v158
    %v794 = vunpack.c.l.b16 %v159
    %v795 = vunpack.c.l.b16 %v160
    %v796 = vunpack.c.l.b16 %v161
    %v797 = vunpack.c.l.b16 %v162
    %v798 = vunpack.c.l.b16 %v163
    %v799 = vunpack.c.l.b16 %v164
    %v800 = vunpack.c.l.b16 %v165
    %v801 = vunpack.c.l.b16 %v166
    %v802 = vunpack.c.l.b16 %v167
    %v803 = vunpack.c.l.b16 %v168
    %v804 = vunpack.c.l.b16 %v169
    %v805 = vunpack.c.l.b16 %v170
    %v806 = vunpack.c.l.b16 %v171
    %v807 = vunpack.c.l.b16 %v172
    %v808 = vunpack.c.l.b16 %v173
    %v809 = vunpack.c.l.b16 %v174
    %v810 = vunpack.c.l.b16 %v175
    %v811 = vunpack.c.l.b16 %v176
    %v812 = vunpack.c.l.b16 %v177
    %v813 = vunpack.c.l.b16 %v178
    %v814 = vunpack.c.l.b16 %v179
    %v815 = vunpack.c.l.b16 %v180
    %v816 = vunpack.c.l.b16 %v181
    %v817 = vunpack.c.l.b16 %v182
    %v818 = vunpack.c.l.b16 %v183
    %v819 = vunpack.c.l.b16 %v184
    %v820 = vunpack.c.l.b16 %v185
    %v821 = vunpack.c.l.b16 %v186
    %v822 = vunpack.c.l.b16 %v187
    %v823 = vunpack.c.l.b16 %v188
    %v824 = vunpack.c.l.b16 %v189
    %v825 = vunpack.c.l.b16 %v190
    %v826 = vunpack.c.l.b16 %v191
    %v827 = vunpack.c.l.b16 %v192
    %v828 = vunpack.c.l.b16 %v193
    %v829 = vunpack.c.l.b16 %v194
    %v830 = vunpack.c.l.b16 %v195
    %v831 = vunpack.c.l.b16 %v196
    %v832 = vunpack.c.l.b16 %v197
    %v833 = vunpack.c.l.b16 %v198
    %v834 = vunpack.c.l.b16 %v199
    %v835 = vunpack.c.l.b16 %v200
    %v836 = vunpack.c.l.b16 %v201
    %v837 = vunpack.c.l.b16 %v202
    %v838 = vunpack.c.l.b16 %v203
    %v839 = vunpack.c.l.b16 %v204
    %v840 = vunpack.c.l.b16 %v205
    %v841 = vunpack.c.l.b16 %v206
    %v842 = vunpack.c.l.b16 %v207
    %v843 = vunpack.c.l.b16 %v208
    %v844 = vunpack.c.l.b16 %v209
    %v845 = vunpack.c.l.b16 %v210
    %v846 = vunpack.c.l.b16 %v211
    %v847 = vunpack.c.l.b16 %v212
    %v848 = vunpack.c.l.b16 %v213
    %v849 = vunpack.c.l.b16 %v214
    %v850 = vunpack.c.l.b16 %v215
    %v851 = vunpack.c.l.b16 %v216
    %v852 = vunpack.c.l.b16 %v217
    %v853 = vunpack.c.l.b16 %v218
    %v854 = vunpack.c.l.b16 %v219
    %v855 = vunpack.c.l.b16 %v220
    %v856 = vunpack.c.l.b16 %v221
    %v857 = vunpack.c.l.b16 %v222
    %v858 = vunpack.c.l.b16 %v223
    %v859 = vunpack.c.l.b16 %v224
    %v860 = vunpack.c.l.b16 %v225
    %v861 = vunpack.c.l.b16 %v226
    %v862 = vunpack.c.l.b16 %v227
    %v863 = vunpack.c.l.b16 %v228
    %v864 = vunpack.c.l.b16 %v229
    %v865 = vunpack.c.l.b16 %v230
    %v866 = vunpack.c.l.b16 %v231
    %v867 = vunpack.c.l.b16 %v232
    %v868 = vunpack.c.l.b16 %v233
    %v869 = vunpack.c.l.b16 %v234
    %v870 = vunpack.c.l.b16 %v235
    %v871 = vunpack.c.l.b16 %v236
    %v872 = vunpack.c.l.b16 %v237
    %v873 = vunpack.c.l.b16 %v238
    %v874 = vunpack.c.l.b16 %v239
    %v875 = vunpack.c.l.b16 %v240
    %v876 = vunpack.c.l.b16 %v241
    %v877 = vunpack.c.l.b16 %v242
    %v878 = vunpack.c.l.b16 %v243
    %v879 = vunpack.c.l.b16 %v244
    %v880 = vunpack.c.l.b16 %v245
    %v881 = vunpack.c.l.b16 %v246
    %v882 = vunpack.c.l.b16 %v247
    %v883 = vunpack.c.l.b16 %v248
    %v884 = vunpack.c.l.b16 %v249
    %v885 = vunpack.c.l.b16 %v250
    %v886 = vunpack.c.l.b16 %v251
    %v887 = vunpack.c.l.b16 %v252
    %v888 = vunpack.c.l.b16 %v253
    %v889 = vunpack.c.l.b16 %v254
    %v890 = vunpack.c.l.b16 %v255
    %v891 = vunpack.c.l.b16 %v256
    %v892 = vunpack.c.l.b16 %v257
    %v893 = vunpack.c.l.b16 %v258
    %v894 = vunpack.c.l.b16 %v259
    %v895 = vunpack.c.l.b16 %v260
    %v896 = vunpack.c.l.b16 %v261
    %v897 = vunpack.c.l.b16 %v262
    %v898 = vunpack.c.l.b16 %v263
    %v899 = vunpack.c.l.b16 %v264
    %v900 = vunpack.c.l.b16 %v265
    %v901 = vunpack.c.l.b16 %v266
    %v902 = vunpack.c.l.b16 %v267
    %v903 = vunpack.c.l.b16 %v268
    %v904 = vunpack.c.l.b16 %v269
    %v905 = vunpack.c.l.b16 %v270
    %v906 = vunpack.c.l.b16 %v271
    %v907 = vunpack.c.l.b16 %v272
    %v908 = vunpack.c.l.b16 %v273
    %v909 = vunpack.c.l.b16 %v274
    %v910 = vunpack.c.l.b16 %v275
    %v911 = vunpack.c.l.b16 %v276
    %v912 = vunpack.c.l.b16 %v277
    %v913 = vunpack.c.l.b16 %v278
    %v914 = vunpack.c.l.b16 %v279
    %v915 = vunpack.c.l.b16 %v280
    %v916 = vunpack.c.l.b16 %v281
    %v917 = vunpack.c.l.b16 %v282
    %v918 = vunpack.c.l.b16 %v283
    %v919 = vunpack.c.l.b16 %v284
    %v920 = vunpack.c.l.b16 %v285
    %v921 = vunpack.c.l.b16 %v286
    %v922 = vunpack.c.l.b16 %v287
    %v923 = vunpack.c.l.b16 %v288
    %v924 = vunpack.c.l.b16 %v289
    %v925 = vunpack.c.l.b16 %v290
    %v926 = vunpack.c.l.b16 %v291
    %v927 = vunpack.c.l.b16 %v292
    %v928 = vunpack.c.l.b16 %v293
    %v929 = vunpack.c.l.b16 %v294
    %v930 = vunpack.c.l.b16 %v295
    %v931 = vunpack.c.l.b16 %v296
    %v932 = vpack.c.b16 %v677, %v676
    %v933 = vpack.c.b16 %v679, %v678
    %v934 = vpack.c.b16 %v681, %v680
    %v935 = vpack.c.b16 %v683, %v682
    %v936 = vpack.c.b16 %v685, %v684
    %v937 = vpack.c.b16 %v687, %v686
    %v938 = vpack.c.b16 %v689, %v688
    %v939 = vpack.c.b16 %v691, %v690
    %v940 = vpack.c.b16 %v693, %v692
    %v941 = vpack.c.b16 %v695, %v694
    %v942 = vpack.c.b16 %v697, %v696
    %v943 = vpack.c.b16 %v699, %v698
    %v944 = vpack.c.b16 %v701, %v700
    %v945 = vpack.c.b16 %v703, %v702
    %v946 = vpack.c.b16 %v705, %v704
    %v947 = vpack.c.b16 %v707, %v706
    %v948 = vpack.c.b16 %v709, %v708
    %v949 = vpack.c.b16 %v711, %v710
    %v950 = vpack.c.b16 %v713, %v712
    %v951 = vpack.c.b16 %v715, %v714
    %v952 = vpack.c.b16 %v717, %v716
    %v953 = vpack.c.b16 %v719, %v718
    %v954 = vpack.c.b16 %v721, %v720
    %v955 = vpack.c.b16 %v723, %v722
    %v956 = vpack.c.b16 %v725, %v724
    %v957 = vpack.c.b16 %v727, %v726
    %v958 = vpack.c.b16 %v729, %v728
    %v959 = vpack.c.b16 %v731, %v730
    %v960 = vpack.c.b16 %v733, %v732
    %v961 = vpack.c.b16 %v735, %v734
    %v962 = vpack.c.b16 %v737, %v736
    %v963 = vpack.c.b16 %v739, %v738
    %v964 = vpack.c.b16 %v741, %v740
    %v965 = vpack.c.b16 %v743, %v742
    %v966 = vpack.c.b16 %v745, %v744
    %v967 = vpack.c.b16 %v747, %v746
    %v968 = vpack.c.b16 %v749, %v748
    %v969 = vpack.c.b16 %v751, %v750
    %v970 = vpack.c.b16 %v753, %v752
    %v971 = vpack.c.b16 %v755, %v754
    %v972 = vpack.c.b16 %v757, %v756
    %v973 = vpack.c.b16 %v759, %v758
    %v974 = vpack.c.b16 %v761, %v760
    %v975 = vpack.c.b16 %v763, %v762
    %v976 = vpack.c.b16 %v765, %v764
    %v977 = vpack.c.b16 %v767, %v766
    %v978 = vpack.c.b16 %v769, %v768
    %v979 = vpack.c.b16 %v771, %v770
    %v980 = vpack.c.b16 %v773, %v772
    %v981 = vpack.c.b16 %v775, %v774
    %v982 = vpack.c.b16 %v777, %v776
    %v983 = vpack.c.b16 %v779, %v778
    %v984 = vpack.c.b16 %v781, %v780
    %v985 = vpack.c.b16 %v783, %v782
    %v986 = vpack.c.b16 %v785, %v784
    %v987 = vpack.c.b16 %v787, %v786
    %v988 = vpack.c.b16 %v789, %v788
    %v989 = vpack.c.b16 %v791, %v790
    %v990 = vpack.c.b16 %v793, %v792
    %v991 = vpack.c.b16 %v795, %v794
    %v992 = vpack.c.b16 %v797, %v796
    %v993 = vpack.c.b16 %v799, %v798
    %v994 = vpack.c.b16 %v801, %v800
    %v995 = vpack.c.b16 %v803, %v802
    %v996 = vpack.c.b16 %v805, %v804
    %v997 = vpack.c.b16 %v807, %v806
    %v998 = vpack.c.b16 %v809, %v808
    %v999 = vpack.c.b16 %v811, %v810
    %v1000 = vpack.c.b16 %v813, %v812
    %v1001 = vpack.c.b16 %v815, %v814
    %v1002 = vpack.c.b16 %v817, %v816
    %v1003 = vpack.c.b16 %v819, %v818
    %v1004 = vpack.c.b16 %v821, %v820
    %v1005 = vpack.c.b16 %v823, %v822
    %v1006 = vpack.c.b16 %v825, %v824
    %v1007 = vpack.c.b16 %v827, %v826
    %v1008 = vpack.c.b16 %v829, %v828
    %v1009 = vpack.c.b16 %v831, %v830
    %v1010 = vpack.c.b16 %v833, %v832
    %v1011 = vpack.c.b16 %v835, %v834
    %v1012 = vpack.c.b16 %v837, %v836
    %v1013 = vpack.c.b16 %v839, %v838
    %v1014 = vpack.c.b16 %v841, %v840
    %v1015 = vpack.c.b16 %v843, %v842
    %v1016 = vpack.c.b16 %v845, %v844
    %v1017 = vpack.c.b16 %v847, %v846
    %v1018 = vpack.c.b16 %v849, %v848
    %v1019 = vpack.c.b16 %v851, %v850
    %v1020 = vpack.c.b16 %v853, %v852
    %v1021 = vpack.c.b16 %v855, %v854
    %v1022 = vpack.c.b16 %v857, %v856
    %v1023 = vpack.c.b16 %v859, %v858
    %v1024 = vpack.c.b16 %v861, %v860
    %v1025 = vpack.c.b16 %v863, %v862
    %v1026 = vpack.c.b16 %v865, %v864
    %v1027 = vpack.c.b16 %v867, %v866
    %v1028 = vpack.c.b16 %v869, %v868
    %v1029 = vpack.c.b16 %v871, %v870
    %v1030 = vpack.c.b16 %v873, %v872
    %v1031 = vpack.c.b16 %v875, %v874
    %v1032 = vpack.c.b16 %v877, %v876
    %v1033 = vpack.c.b16 %v879, %v878
    %v1034 = vpack.c.b16 %v881, %v880
    %v1035 = vpack.c.b16 %v883, %v882
    %v1036 = vpack.c.b16 %v885, %v884
    %v1037 = vpack.c.b16 %v887, %v886
    %v1038 = vpack.c.b16 %v889, %v888
    %v1039 = vpack.c.b16 %v891, %v890
    %v1040 = vpack.c.b16 %v893, %v892
    %v1041 = vpack.c.b16 %v895, %v894
    %v1042 = vpack.c.b16 %v897, %v896
    %v1043 = vpack.c.b16 %v899, %v898
    %v1044 = vpack.c.b16 %v901, %v900
    %v1045 = vpack.c.b16 %v903, %v902
    %v1046 = vpack.c.b16 %v905, %v904
    %v1047 = vpack.c.b16 %v907, %v906
    %v1048 = vpack.c.b16 %v909, %v908
    %v1049 = vpack.c.b16 %v911, %v910
    %v1050 = vpack.c.b16 %v913, %v912
    %v1051 = vpack.c.b16 %v915, %v914
    %v1052 = vpack.c.b16 %v917, %v916
    %v1053 = vpack.c.b16 %v919, %v918
    %v1054 = vpack.c.b16 %v921, %v920
    %v1055 = vpack.c.b16 %v923, %v922
    %v1056 = vpack.c.b16 %v925, %v924
    %v1057 = vpack.c.b16 %v927, %v926
    %v1058 = vpack.c.b16 %v929, %v928
    %v1059 = vpack.c.b16 %v931, %v930
    %1188 = vmatprep.subr.bf16.mxu0 0
    %1189 = vmatpush1.bf16.msra.mxu0 %v932
    %1190 = vmatprep.subr.bf16.mxu0 0
    %1191 = vmatpush1.bf16.msra.mxu0 %v933
    %1192 = vmatprep.subr.bf16.mxu0 0
    %1193 = vmatpush1.bf16.msra.mxu0 %v934
    %1194 = vmatprep.subr.bf16.mxu0 0
    %1195 = vmatpush1.bf16.msra.mxu0 %v935
    %1196 = vmatprep.subr.bf16.mxu0 0
    %1197 = vmatpush1.bf16.msra.mxu0 %v936
    %1198 = vmatprep.subr.bf16.mxu0 0
    %1199 = vmatpush1.bf16.msra.mxu0 %v937
    %1200 = vmatprep.subr.bf16.mxu0 0
    %1201 = vmatpush1.bf16.msra.mxu0 %v938
    %1202 = vmatprep.subr.bf16.mxu0 0
    %1203 = vmatpush1.bf16.msra.mxu0 %v939
    %1204 = vmatprep.subr.bf16.mxu0 0
    %1205 = vmatpush1.bf16.msra.mxu0 %v940
    %1206 = vmatprep.subr.bf16.mxu0 0
    %1207 = vmatpush1.bf16.msra.mxu0 %v941
    %1208 = vmatprep.subr.bf16.mxu0 0
    %1209 = vmatpush1.bf16.msra.mxu0 %v942
    %1210 = vmatprep.subr.bf16.mxu0 0
    %1211 = vmatpush1.bf16.msra.mxu0 %v943
    %1212 = vmatprep.subr.bf16.mxu0 0
    %1213 = vmatpush1.bf16.msra.mxu0 %v944
    %1214 = vmatprep.subr.bf16.mxu0 0
    %1215 = vmatpush1.bf16.msra.mxu0 %v945
    %1216 = vmatprep.subr.bf16.mxu0 0
    %1217 = vmatpush1.bf16.msra.mxu0 %v946
    %1218 = vmatprep.subr.bf16.mxu0 0
    %1219 = vmatpush1.bf16.msra.mxu0 %v947
    %1220 = vmatprep.mubr.bf16.mxu0 %v343
    %1221 = vmatmul.mubr.bf16.gmra.mrb[0].mxu0 %v329
    %v1222 = vpop.f32.mrb[0].mxu0
    %v1223 = vadd.f32 %v302, %v1222
    %v1224 = vpop.f32.mrb[0].mxu0
    %v1225 = vpop.f32.mrb[0].mxu0
    %v1226 = vpop.f32.mrb[0].mxu0
    %1227 = vdwg.mxu0
    %1228 = vmatprep.subr.bf16.mxu0 0
    %1229 = vmatpush1.bf16.msra.mxu0 %v948
    %1230 = vmatprep.subr.bf16.mxu0 0
    %1231 = vmatpush1.bf16.msra.mxu0 %v949
    %1232 = vmatprep.subr.bf16.mxu0 0
    %1233 = vmatpush1.bf16.msra.mxu0 %v950
    %1234 = vmatprep.subr.bf16.mxu0 0
    %1235 = vmatpush1.bf16.msra.mxu0 %v951
    %1236 = vmatprep.subr.bf16.mxu0 0
    %1237 = vmatpush1.bf16.msra.mxu0 %v952
    %1238 = vmatprep.subr.bf16.mxu0 0
    %1239 = vmatpush1.bf16.msra.mxu0 %v953
    %1240 = vmatprep.subr.bf16.mxu0 0
    %1241 = vmatpush1.bf16.msra.mxu0 %v954
    %1242 = vmatprep.subr.bf16.mxu0 0
    %1243 = vmatpush1.bf16.msra.mxu0 %v955
    %1244 = vmatprep.subr.bf16.mxu0 0
    %1245 = vmatpush1.bf16.msra.mxu0 %v956
    %1246 = vmatprep.subr.bf16.mxu0 0
    %1247 = vmatpush1.bf16.msra.mxu0 %v957
    %1248 = vmatprep.subr.bf16.mxu0 0
    %1249 = vmatpush1.bf16.msra.mxu0 %v958
    %1250 = vmatprep.subr.bf16.mxu0 0
    %1251 = vmatpush1.bf16.msra.mxu0 %v959
    %1252 = vmatprep.subr.bf16.mxu0 0
    %1253 = vmatpush1.bf16.msra.mxu0 %v960
    %1254 = vmatprep.subr.bf16.mxu0 0
    %1255 = vmatpush1.bf16.msra.mxu0 %v961
    %1256 = vmatprep.subr.bf16.mxu0 0
    %1257 = vmatpush1.bf16.msra.mxu0 %v962
    %1258 = vmatprep.subr.bf16.mxu0 0
    %1259 = vmatpush1.bf16.msra.mxu0 %v963
    %1260 = vmatprep.mubr.bf16.mxu0 %v353
    %1261 = vmatmul.mubr.bf16.gmra.mrb[0].mxu0 %v351
    %v1262 = vpop.f32.mrb[0].mxu0
    %v1263 = vadd.f32 %v1223, %v1262
    %v1264 = vpop.f32.mrb[0].mxu0
    %v1265 = vpop.f32.mrb[0].mxu0
    %v1266 = vpop.f32.mrb[0].mxu0
    %1267 = vdwg.mxu0
    %1268 = vmatprep.subr.bf16.mxu0 0
    %1269 = vmatpush1.bf16.msra.mxu0 %v964
    %1270 = vmatprep.subr.bf16.mxu0 0
    %1271 = vmatpush1.bf16.msra.mxu0 %v965
    %1272 = vmatprep.subr.bf16.mxu0 0
    %1273 = vmatpush1.bf16.msra.mxu0 %v966
    %1274 = vmatprep.subr.bf16.mxu0 0
    %1275 = vmatpush1.bf16.msra.mxu0 %v967
    %1276 = vmatprep.subr.bf16.mxu0 0
    %1277 = vmatpush1.bf16.msra.mxu0 %v968
    %1278 = vmatprep.subr.bf16.mxu0 0
    %1279 = vmatpush1.bf16.msra.mxu0 %v969
    %1280 = vmatprep.subr.bf16.mxu0 0
    %1281 = vmatpush1.bf16.msra.mxu0 %v970
    %1282 = vmatprep.subr.bf16.mxu0 0
    %1283 = vmatpush1.bf16.msra.mxu0 %v971
    %1284 = vmatprep.subr.bf16.mxu0 0
    %1285 = vmatpush1.bf16.msra.mxu0 %v972
    %1286 = vmatprep.subr.bf16.mxu0 0
    %1287 = vmatpush1.bf16.msra.mxu0 %v973
    %1288 = vmatprep.subr.bf16.mxu0 0
    %1289 = vmatpush1.bf16.msra.mxu0 %v974
    %1290 = vmatprep.subr.bf16.mxu0 0
    %1291 = vmatpush1.bf16.msra.mxu0 %v975
    %1292 = vmatprep.subr.bf16.mxu0 0
    %1293 = vmatpush1.bf16.msra.mxu0 %v976
    %1294 = vmatprep.subr.bf16.mxu0 0
    %1295 = vmatpush1.bf16.msra.mxu0 %v977
    %1296 = vmatprep.subr.bf16.mxu0 0
    %1297 = vmatpush1.bf16.msra.mxu0 %v978
    %1298 = vmatprep.subr.bf16.mxu0 0
    %1299 = vmatpush1.bf16.msra.mxu0 %v979
    %1300 = vmatprep.mubr.bf16.mxu0 %v350
    %1301 = vmatmul.mubr.bf16.gmra.mrb[0].mxu0 %v336
    %v1302 = vpop.f32.mrb[0].mxu0
    %v1303 = vadd.f32 %v1263, %v1302
    %v1304 = vpop.f32.mrb[0].mxu0
    %v1305 = vpop.f32.mrb[0].mxu0
    %v1306 = vpop.f32.mrb[0].mxu0
    %1307 = vdwg.mxu0
    %1308 = vmatprep.subr.bf16.mxu0 0
    %1309 = vmatpush1.bf16.msra.mxu0 %v980
    %1310 = vmatprep.subr.bf16.mxu0 0
    %1311 = vmatpush1.bf16.msra.mxu0 %v981
    %1312 = vmatprep.subr.bf16.mxu0 0
    %1313 = vmatpush1.bf16.msra.mxu0 %v982
    %1314 = vmatprep.subr.bf16.mxu0 0
    %1315 = vmatpush1.bf16.msra.mxu0 %v983
    %1316 = vmatprep.subr.bf16.mxu0 0
    %1317 = vmatpush1.bf16.msra.mxu0 %v984
    %1318 = vmatprep.subr.bf16.mxu0 0
    %1319 = vmatpush1.bf16.msra.mxu0 %v985
    %1320 = vmatprep.subr.bf16.mxu0 0
    %1321 = vmatpush1.bf16.msra.mxu0 %v986
    %1322 = vmatprep.subr.bf16.mxu0 0
    %1323 = vmatpush1.bf16.msra.mxu0 %v987
    %1324 = vmatprep.subr.bf16.mxu0 0
    %1325 = vmatpush1.bf16.msra.mxu0 %v988
    %1326 = vmatprep.subr.bf16.mxu0 0
    %1327 = vmatpush1.bf16.msra.mxu0 %v989
    %1328 = vmatprep.subr.bf16.mxu0 0
    %1329 = vmatpush1.bf16.msra.mxu0 %v990
    %1330 = vmatprep.subr.bf16.mxu0 0
    %1331 = vmatpush1.bf16.msra.mxu0 %v991
    %1332 = vmatprep.subr.bf16.mxu0 0
    %1333 = vmatpush1.bf16.msra.mxu0 %v992
    %1334 = vmatprep.subr.bf16.mxu0 0
    %1335 = vmatpush1.bf16.msra.mxu0 %v993
    %1336 = vmatprep.subr.bf16.mxu0 0
    %1337 = vmatpush1.bf16.msra.mxu0 %v994
    %1338 = vmatprep.subr.bf16.mxu0 0
    %1339 = vmatpush1.bf16.msra.mxu0 %v995
    %1340 = vmatprep.mubr.bf16.mxu0 %v354
    %1341 = vmatmul.mubr.bf16.gmra.mrb[0].mxu0 %v352
    %v1342 = vpop.f32.mrb[0].mxu0
    %v1343 = vadd.f32 %v1303, %v1342
    %v1344 = vpop.f32.mrb[0].mxu0
    %v1345 = vpop.f32.mrb[0].mxu0
    %v1346 = vpop.f32.mrb[0].mxu0
    %1347 = vdwg.mxu0
    %1348 = vmatprep.subr.bf16.mxu0 0
    %1349 = vmatpush1.bf16.msra.mxu0 %v996
    %1350 = vmatprep.subr.bf16.mxu0 0
    %1351 = vmatpush1.bf16.msra.mxu0 %v997
    %1352 = vmatprep.subr.bf16.mxu0 0
    %1353 = vmatpush1.bf16.msra.mxu0 %v998
    %1354 = vmatprep.subr.bf16.mxu0 0
    %1355 = vmatpush1.bf16.msra.mxu0 %v999
    %1356 = vmatprep.subr.bf16.mxu0 0
    %1357 = vmatpush1.bf16.msra.mxu0 %v1000
    %1358 = vmatprep.subr.bf16.mxu0 0
    %1359 = vmatpush1.bf16.msra.mxu0 %v1001
    %1360 = vmatprep.subr.bf16.mxu0 0
    %1361 = vmatpush1.bf16.msra.mxu0 %v1002
    %1362 = vmatprep.subr.bf16.mxu0 0
    %1363 = vmatpush1.bf16.msra.mxu0 %v1003
    %1364 = vmatprep.subr.bf16.mxu0 0
    %1365 = vmatpush1.bf16.msra.mxu0 %v1004
    %1366 = vmatprep.subr.bf16.mxu0 0
    %1367 = vmatpush1.bf16.msra.mxu0 %v1005
    %1368 = vmatprep.subr.bf16.mxu0 0
    %1369 = vmatpush1.bf16.msra.mxu0 %v1006
    %1370 = vmatprep.subr.bf16.mxu0 0
    %1371 = vmatpush1.bf16.msra.mxu0 %v1007
    %1372 = vmatprep.subr.bf16.mxu0 0
    %1373 = vmatpush1.bf16.msra.mxu0 %v1008
    %1374 = vmatprep.subr.bf16.mxu0 0
    %1375 = vmatpush1.bf16.msra.mxu0 %v1009
    %1376 = vmatprep.subr.bf16.mxu0 0
    %1377 = vmatpush1.bf16.msra.mxu0 %v1010
    %1378 = vmatprep.subr.bf16.mxu0 0
    %1379 = vmatpush1.bf16.msra.mxu0 %v1011
    %1380 = vmatprep.mubr.bf16.mxu0 %v392
    %1381 = vmatmul.mubr.bf16.gmra.mrb[0].mxu0 %v378
    %v1382 = vpop.f32.mrb[0].mxu0
    %v1383 = vadd.f32 %v1343, %v1382
    %v1384 = vpop.f32.mrb[0].mxu0
    %v1385 = vpop.f32.mrb[0].mxu0
    %v1386 = vpop.f32.mrb[0].mxu0
    %1387 = vdwg.mxu0
    %1388 = vmatprep.subr.bf16.mxu0 0
    %1389 = vmatpush1.bf16.msra.mxu0 %v1012
    %1390 = vmatprep.subr.bf16.mxu0 0
    %1391 = vmatpush1.bf16.msra.mxu0 %v1013
    %1392 = vmatprep.subr.bf16.mxu0 0
    %1393 = vmatpush1.bf16.msra.mxu0 %v1014
    %1394 = vmatprep.subr.bf16.mxu0 0
    %1395 = vmatpush1.bf16.msra.mxu0 %v1015
    %1396 = vmatprep.subr.bf16.mxu0 0
    %1397 = vmatpush1.bf16.msra.mxu0 %v1016
    %1398 = vmatprep.subr.bf16.mxu0 0
    %1399 = vmatpush1.bf16.msra.mxu0 %v1017
    %1400 = vmatprep.subr.bf16.mxu0 0
    %1401 = vmatpush1.bf16.msra.mxu0 %v1018
    %1402 = vmatprep.subr.bf16.mxu0 0
    %1403 = vmatpush1.bf16.msra.mxu0 %v1019
    %1404 = vmatprep.subr.bf16.mxu0 0
    %1405 = vmatpush1.bf16.msra.mxu0 %v1020
    %1406 = vmatprep.subr.bf16.mxu0 0
    %1407 = vmatpush1.bf16.msra.mxu0 %v1021
    %1408 = vmatprep.subr.bf16.mxu0 0
    %1409 = vmatpush1.bf16.msra.mxu0 %v1022
    %1410 = vmatprep.subr.bf16.mxu0 0
    %1411 = vmatpush1.bf16.msra.mxu0 %v1023
    %1412 = vmatprep.subr.bf16.mxu0 0
    %1413 = vmatpush1.bf16.msra.mxu0 %v1024
    %1414 = vmatprep.subr.bf16.mxu0 0
    %1415 = vmatpush1.bf16.msra.mxu0 %v1025
    %1416 = vmatprep.subr.bf16.mxu0 0
    %1417 = vmatpush1.bf16.msra.mxu0 %v1026
    %1418 = vmatprep.subr.bf16.mxu0 0
    %1419 = vmatpush1.bf16.msra.mxu0 %v1027
    %1420 = vmatprep.mubr.bf16.mxu0 %v402
    %1421 = vmatmul.mubr.bf16.gmra.mrb[0].mxu0 %v400
    %v1422 = vpop.f32.mrb[0].mxu0
    %v1423 = vadd.f32 %v1383, %v1422
    %v1424 = vpop.f32.mrb[0].mxu0
    %v1425 = vpop.f32.mrb[0].mxu0
    %v1426 = vpop.f32.mrb[0].mxu0
    %1427 = vdwg.mxu0
    %1428 = vmatprep.subr.bf16.mxu0 0
    %1429 = vmatpush1.bf16.msra.mxu0 %v1028
    %1430 = vmatprep.subr.bf16.mxu0 0
    %1431 = vmatpush1.bf16.msra.mxu0 %v1029
    %1432 = vmatprep.subr.bf16.mxu0 0
    %1433 = vmatpush1.bf16.msra.mxu0 %v1030
    %1434 = vmatprep.subr.bf16.mxu0 0
    %1435 = vmatpush1.bf16.msra.mxu0 %v1031
    %1436 = vmatprep.subr.bf16.mxu0 0
    %1437 = vmatpush1.bf16.msra.mxu0 %v1032
    %1438 = vmatprep.subr.bf16.mxu0 0
    %1439 = vmatpush1.bf16.msra.mxu0 %v1033
    %1440 = vmatprep.subr.bf16.mxu0 0
    %1441 = vmatpush1.bf16.msra.mxu0 %v1034
    %1442 = vmatprep.subr.bf16.mxu0 0
    %1443 = vmatpush1.bf16.msra.mxu0 %v1035
    %1444 = vmatprep.subr.bf16.mxu0 0
    %1445 = vmatpush1.bf16.msra.mxu0 %v1036
    %1446 = vmatprep.subr.bf16.mxu0 0
    %1447 = vmatpush1.bf16.msra.mxu0 %v1037
    %1448 = vmatprep.subr.bf16.mxu0 0
    %1449 = vmatpush1.bf16.msra.mxu0 %v1038
    %1450 = vmatprep.subr.bf16.mxu0 0
    %1451 = vmatpush1.bf16.msra.mxu0 %v1039
    %1452 = vmatprep.subr.bf16.mxu0 0
    %1453 = vmatpush1.bf16.msra.mxu0 %v1040
    %1454 = vmatprep.subr.bf16.mxu0 0
    %1455 = vmatpush1.bf16.msra.mxu0 %v1041
    %1456 = vmatprep.subr.bf16.mxu0 0
    %1457 = vmatpush1.bf16.msra.mxu0 %v1042
    %1458 = vmatprep.subr.bf16.mxu0 0
    %1459 = vmatpush1.bf16.msra.mxu0 %v1043
    %1460 = vmatprep.mubr.bf16.mxu0 %v399
    %1461 = vmatmul.mubr.bf16.gmra.mrb[0].mxu0 %v385
    %v1462 = vpop.f32.mrb[0].mxu0
    %v1463 = vadd.f32 %v1423, %v1462
    %v1464 = vpop.f32.mrb[0].mxu0
    %v1465 = vpop.f32.mrb[0].mxu0
    %v1466 = vpop.f32.mrb[0].mxu0
    %1467 = vdwg.mxu0
    %1468 = vmatprep.subr.bf16.mxu0 0
    %1469 = vmatpush1.bf16.msra.mxu0 %v1044
    %1470 = vmatprep.subr.bf16.mxu0 0
    %1471 = vmatpush1.bf16.msra.mxu0 %v1045
    %1472 = vmatprep.subr.bf16.mxu0 0
    %1473 = vmatpush1.bf16.msra.mxu0 %v1046
    %1474 = vmatprep.subr.bf16.mxu0 0
    %1475 = vmatpush1.bf16.msra.mxu0 %v1047
    %1476 = vmatprep.subr.bf16.mxu0 0
    %1477 = vmatpush1.bf16.msra.mxu0 %v1048
    %1478 = vmatprep.subr.bf16.mxu0 0
    %1479 = vmatpush1.bf16.msra.mxu0 %v1049
    %1480 = vmatprep.subr.bf16.mxu0 0
    %1481 = vmatpush1.bf16.msra.mxu0 %v1050
    %1482 = vmatprep.subr.bf16.mxu0 0
    %1483 = vmatpush1.bf16.msra.mxu0 %v1051
    %1484 = vmatprep.subr.bf16.mxu0 0
    %1485 = vmatpush1.bf16.msra.mxu0 %v1052
    %1486 = vmatprep.subr.bf16.mxu0 0
    %1487 = vmatpush1.bf16.msra.mxu0 %v1053
    %1488 = vmatprep.subr.bf16.mxu0 0
    %1489 = vmatpush1.bf16.msra.mxu0 %v1054
    %1490 = vmatprep.subr.bf16.mxu0 0
    %1491 = vmatpush1.bf16.msra.mxu0 %v1055
    %1492 = vmatprep.subr.bf16.mxu0 0
    %1493 = vmatpush1.bf16.msra.mxu0 %v1056
    %1494 = vmatprep.subr.bf16.mxu0 0
    %1495 = vmatpush1.bf16.msra.mxu0 %v1057
    %1496 = vmatprep.subr.bf16.mxu0 0
    %1497 = vmatpush1.bf16.msra.mxu0 %v1058
    %1498 = vmatprep.subr.bf16.mxu0 0
    %1499 = vmatpush1.bf16.msra.mxu0 %v1059
    %1500 = vmatprep.mubr.bf16.mxu0 %v403
    %1501 = vmatmul.mubr.bf16.gmra.mrb[0].mxu0 %v401
    %v1502 = vpop.f32.mrb[0].mxu0
    %v1503 = vadd.f32 %v1463, %v1502
    %v1504 = vpop.f32.mrb[0].mxu0
    %v1505 = vpop.f32.mrb[0].mxu0
    %v1506 = vpop.f32.mrb[0].mxu0
    %1507 = vdwg.mxu0
    %vm1508 = vcmask 1041408
    %v1509 = vsel %vm1508, %v1503, -inf
    %1510 = vmax.xlane.f32.xlu0 %v1509
    %v1511 = vpop.xlane.xlu0 %1510
    %v1512 = vsub.f32 %v1503, %v1511
    %v1513 = vmul.f32 %v1512, 1.442695
    %v1514 = vpow.pop %v1513
    %v1515 = vsel %vm1508, %v1514, 0.0
    %1516 = vadd.xlane.f32.xlu0 %v1515
    %v1517 = vpop.xlane.xlu0 %1516
    %v1518 = vrcp.pop %v1517
    %v1519 = vmul.f32 %v1514, %v1518
    %v1520 = vpack.c.bf16 %v1519, %v1519
    %v1521 = vld [vmem:[%s3] sm:$0xf]
    %v1522 = vld [vmem:[%s3 + $0x4] sm:$0xf]
    %v1523 = vld [vmem:[%s3 + $0x8] sm:$0xf]
    %v1524 = vld [vmem:[%s3 + $0xc] sm:$0xf]
    %v1525 = vld [vmem:[%s3 + $0x10] sm:$0xf]
    %v1526 = vld [vmem:[%s3 + $0x14] sm:$0xf]
    %v1527 = vld [vmem:[%s3 + $0x18] sm:$0xf]
    %v1528 = vld [vmem:[%s3 + $0x1c] sm:$0xf]
    %v1529 = vld [vmem:[%s3 + $0x20] sm:$0xf]
    %v1530 = vld [vmem:[%s3 + $0x24] sm:$0xf]
    %v1531 = vld [vmem:[%s3 + $0x28] sm:$0xf]
    %v1532 = vld [vmem:[%s3 + $0x2c] sm:$0xf]
    %v1533 = vld [vmem:[%s3 + $0x30] sm:$0xf]
    %v1534 = vld [vmem:[%s3 + $0x34] sm:$0xf]
    %v1535 = vld [vmem:[%s3 + $0x38] sm:$0xf]
    %v1536 = vld [vmem:[%s3 + $0x3c] sm:$0xf]
    %v1537 = vld [vmem:[%s4] sm:$0x1]
    %v1539 = vlaneseq
    %v1540 = vshrl.u32 %v1539, 7
    %v1541 = vsub.s32 0, %v1540
    %v1542 = vrot.slane %v1537, %v1541
    %v1560 = vunpack.c.l.b16 %v1521
    %v1561 = vunpack.c.l.b16 %v1522
    %v1562 = vunpack.c.l.b16 %v1523
    %v1563 = vunpack.c.l.b16 %v1524
    %v1564 = vunpack.c.l.b16 %v1525
    %v1565 = vunpack.c.l.b16 %v1526
    %v1566 = vunpack.c.l.b16 %v1527
    %v1567 = vunpack.c.l.b16 %v1528
    %v1568 = vunpack.c.l.b16 %v1529
    %v1569 = vunpack.c.l.b16 %v1530
    %v1570 = vunpack.c.l.b16 %v1531
    %v1571 = vunpack.c.l.b16 %v1532
    %v1572 = vunpack.c.l.b16 %v1533
    %v1573 = vunpack.c.l.b16 %v1534
    %v1574 = vunpack.c.l.b16 %v1535
    %v1575 = vunpack.c.l.b16 %v1536
    %v1576 = vpack.c.b16 %v1561, %v1560
    %v1577 = vpack.c.b16 %v1563, %v1562
    %v1578 = vpack.c.b16 %v1565, %v1564
    %v1579 = vpack.c.b16 %v1567, %v1566
    %v1580 = vpack.c.b16 %v1569, %v1568
    %v1581 = vpack.c.b16 %v1571, %v1570
    %v1582 = vpack.c.b16 %v1573, %v1572
    %v1583 = vpack.c.b16 %v1575, %v1574
    %1592 = vmatprep.subr.bf16.mxu0 0
    %1593 = vmatpush1.bf16.msra.mxu0 %v1576
    %1594 = vmatprep.subr.bf16.mxu0 0
    %1595 = vmatpush1.bf16.msra.mxu0 %v1577
    %1596 = vmatprep.subr.bf16.mxu0 0
    %1597 = vmatpush1.bf16.msra.mxu0 %v1578
    %1598 = vmatprep.subr.bf16.mxu0 0
    %1599 = vmatpush1.bf16.msra.mxu0 %v1579
    %1600 = vmatprep.subr.bf16.mxu0 0
    %1601 = vmatpush1.bf16.msra.mxu0 %v1580
    %1602 = vmatprep.subr.bf16.mxu0 0
    %1603 = vmatpush1.bf16.msra.mxu0 %v1581
    %1604 = vmatprep.subr.bf16.mxu0 0
    %1605 = vmatpush1.bf16.msra.mxu0 %v1582
    %1606 = vmatprep.subr.bf16.mxu0 0
    %1607 = vmatpush1.bf16.msra.mxu0 %v1583
    %1608 = vmatprep.subr.bf16.mxu0 0
    %1609 = vmatpush1.bf16.msra.mxu0 0
    %1610 = vmatprep.subr.bf16.mxu0 0
    %1611 = vmatpush1.bf16.msra.mxu0 0
    %1612 = vmatprep.subr.bf16.mxu0 0
    %1613 = vmatpush1.bf16.msra.mxu0 0
    %1614 = vmatprep.subr.bf16.mxu0 0
    %1615 = vmatpush1.bf16.msra.mxu0 0
    %1616 = vmatprep.subr.bf16.mxu0 0
    %1617 = vmatpush1.bf16.msra.mxu0 0
    %1618 = vmatprep.subr.bf16.mxu0 0
    %1619 = vmatpush1.bf16.msra.mxu0 0
    %1620 = vmatprep.subr.bf16.mxu0 0
    %1621 = vmatpush1.bf16.msra.mxu0 0
    %1622 = vmatprep.subr.bf16.mxu0 0
    %1623 = vmatpush1.bf16.msra.mxu0 0
    %1624 = vmatprep.mubr.bf16.mxu0 0
    %1625 = vmatmul.mubr.bf16.gmra.mrb[0].mxu0 %v1520
    %v1626 = vpop.f32.mrb[0].mxu0
    %v1627 = vadd.f32 %v1542, %v1626
    %v1628 = vpop.f32.mrb[0].mxu0
    %v1629 = vpop.f32.mrb[0].mxu0
    %v1630 = vpop.f32.mrb[0].mxu0
    %1631 = vdwg.mxu0
    %v1632 = vsel %vm1508, %v1627, -inf
    %1633 = vmax.xlane.f32.xlu0 %v1632
    %v1634 = vpop.xlane.xlu0 %1633
    %v1635 = vsub.f32 %v1627, %v1634
    %v1636 = vmul.f32 %v1635, 1.442695
    %v1637 = vpow.pop %v1636
    %v1638 = vsel %vm1508, %v1637, 0.0
    %1639 = vadd.xlane.f32.xlu0 %v1638
    %v1640 = vpop.xlane.xlu0 %1639
    %v1641 = vrcp.pop %v1640
    %v1642 = vmul.f32 %v1637, %v1641
    %1643 = vst [vmem:[#allocation5] sm:$0x3] %v1519
    %1644 = vst [vmem:[#allocation6] sm:$0x3] %v1642
    // Predicated region
    $region26: #{run_head.1} parent=1 // pred_check
      _
    $region27: #{run_head.1} parent=1 // pred_check_branch
      %1646 = sbr.rel (0) target = $region29
    $region28: #{run_head.1} parent=1 // pred_region
      %s1648 = ssub.s32 32, 32
      %1649 = vsyncadd [#allocation4], %s1648
      %s1651 = sshll.u32 [#allocation5], 4
      %s1652 = int_to_ptr.vmem [resolvable:$true] %s1651
      %1654 = dma.vmem_to_hbm [thread:$0]  %s1652, 32, %s5, [#allocation4]
    $region29: #{run_head.1} parent=1 // pred_fallthru
      _
    // Predicated region
    $region30: #{run_head.1} parent=1 // pred_check
      _
    $region31: #{run_head.1} parent=1 // pred_check_branch
      %1656 = sbr.rel (0) target = $region33
    $region32: #{run_head.1} parent=1 // pred_region
      %s1658 = ssub.s32 32, 32
      %1659 = vsyncadd [#allocation7], %s1658
      %s1661 = sshll.u32 [#allocation6], 4
      %s1662 = int_to_ptr.vmem [resolvable:$true] %s1661
      %1664 = dma.vmem_to_hbm [thread:$0]  %s1662, 32, %s6, [#allocation7]
    $region33: #{run_head.1} parent=1 // pred_fallthru
      _
    // Predicated region
    $region34: #{run_head.1} parent=1 // pred_check
      _
    $region35: #{run_head.1} parent=1 // pred_check_branch
      %1666 = sbr.rel (0) target = $region37
    $region36: #{run_head.1} parent=1 // pred_region
      %1667 = dma.done [#allocation4], 32
    $region37: #{run_head.1} parent=1 // pred_fallthru
      _
    // Predicated region
    $region38: #{run_head.1} parent=1 // pred_check
      _
    $region39: #{run_head.1} parent=1 // pred_check_branch
      %1669 = sbr.rel (0) target = $region41
    $region40: #{run_head.1} parent=1 // pred_region
      %1670 = dma.done [#allocation7], 32
    $region41: #{run_head.1} parent=1 // pred_fallthru
      _
    %1671 = vsyncpa [#allocation3], 1
    %1672 = vsyncpa [#allocation4], 1
    %1673 = vsyncpa [#allocation7], 1

</llo_original>
